<compile_context>
chip_gen: v7x
topology: tpu7x:2x2x1
jax: 0.10.0
libtpu: 0.0.40
codegen_flags: <defaults>
</compile_context>

<pallas_src>
import jax
import jax.numpy as jnp
from jax.experimental import pallas as pl
from jax.experimental.pallas import tpu as pltpu


def _round_up(x, m):
    return ((x + m - 1) // m) * m


def _pick_tile(target, total_aligned, granule=128):
    """Largest multiple of `granule` that divides `total_aligned` and is <= target."""
    target = max(target, granule)
    q = total_aligned // granule
    best = 1
    d = 1
    while d * d <= q:
        if q % d == 0:
            if d * granule <= target:
                best = max(best, d)
            other = q // d
            if other * granule <= target:
                best = max(best, other)
        d += 1
    return best * granule


# ----------------------------- kernels --------------------------------------
def _mm_kernel_bias(x_ref, w_ref, b_ref, o_ref, acc_ref):
    """Grid = (., ., K tiles); K (axis 2) is the sequential reduction axis."""
    k = pl.program_id(2)

    @pl.when(k == 0)
    def _init():
        acc_ref[...] = jnp.zeros_like(acc_ref)

    acc_ref[...] += jnp.dot(x_ref[...], w_ref[...],
                            preferred_element_type=jnp.float32)

    @pl.when(k == pl.num_programs(2) - 1)
    def _finalize():
        o_ref[...] = (acc_ref[...] + b_ref[...]).astype(o_ref.dtype)


def _mm_kernel_nobias(x_ref, w_ref, o_ref, acc_ref):
    k = pl.program_id(2)

    @pl.when(k == 0)
    def _init():
        acc_ref[...] = jnp.zeros_like(acc_ref)

    acc_ref[...] += jnp.dot(x_ref[...], w_ref[...],
                            preferred_element_type=jnp.float32)

    @pl.when(k == pl.num_programs(2) - 1)
    def _finalize():
        o_ref[...] = acc_ref[...].astype(o_ref.dtype)


def _mm_k1_kernel_bias(x_ref, w_ref, b_ref, o_ref):
    """k_tiles == 1 specialization: no accumulator scratch, single store."""
    o_ref[...] = (jnp.dot(x_ref[...], w_ref[...],
                          preferred_element_type=jnp.float32)
                  + b_ref[...]).astype(o_ref.dtype)


def _mm_k1_kernel_nobias(x_ref, w_ref, o_ref):
    o_ref[...] = jnp.dot(x_ref[...], w_ref[...],
                         preferred_element_type=jnp.float32).astype(o_ref.dtype)


# ------------------------- one-time parameter prep ---------------------------
def prepare_dynamic_linear_weight(weight, compute_dtype=None):
    """Transpose (out,in) -> (in,out), cast, and pad once to 128-aligned dims.

    Doing this at parameter-prep time means the per-call wrapper never copies
    the weight (the kernel's index_map only DMAs the active tiles), and the
    kernel consumes W in standard (K, N) layout (no in-kernel transpose).
    """
    max_out, max_in = weight.shape
    cd = jnp.dtype(compute_dtype) if compute_dtype is not None else jnp.dtype(weight.dtype)
    k_max = _round_up(max_in, 128)
    n_max = _round_up(max_out, 128)
    w_t = jnp.swapaxes(weight, 0, 1).astype(cd)          # (max_in, max_out)
    if (k_max, n_max) != (max_in, max_out):
        w_t = jnp.pad(w_t, ((0, k_max - max_in), (0, n_max - max_out)))
    return w_t


def prepare_dynamic_linear_bias(bias):
    """Bias as an f32 (1, N_max) row, padded once to a 128-aligned width."""
    n = bias.shape[0]
    n_max = _round_up(n, 128)
    b = bias.astype(jnp.float32).reshape(1, n)
    if n_max != n:
        b = jnp.pad(b, ((0, 0), (0, n_max - n)))
    return b


# ------------------------------ main wrapper ---------------------------------
def dynamic_linear_t(x, weight_t, bias_row=None, out_features=None, *,
                     compute_dtype=None, tm=256, tn=512, tk=1024):
    """Pallas DynamicLinear.forward on a prepared (transposed, aligned) weight.

    x:         (batch, in_features)
    weight_t:  (K_max, N_max) = prepare_dynamic_linear_weight(weight)
    bias_row:  (1, N_max) f32 = prepare_dynamic_linear_bias(bias), or None
    out_features: active output width (defaults to weight_t.shape[1])
    """
    B, in_features = x.shape
    k_max, n_max = weight_t.shape
    if out_features is None:
        out_features = n_max
    assert in_features <= k_max and out_features <= n_max

    cd = jnp.dtype(compute_dtype) if compute_dtype is not None else jnp.dtype(x.dtype)
    out_dtype = x.dtype
    obytes = jnp.dtype(out_dtype).itemsize
    cbytes = cd.itemsize
    wbytes = jnp.dtype(weight_t.dtype).itemsize

    # Sublane granularity: 8 for 32-bit, 16 for bf16/f16 (sub-32-bit packing).
    sub = 32 // min(cbytes, obytes)

    # ---- tile plan: tn/tk divide the 128-aligned active dims, so the tile
    # grid never reads past the prepared parameter (no per-call weight copy).
    n_active = _round_up(out_features, 128)
    k_active = _round_up(in_features, 128)
    tn = _pick_tile(tn, n_active)
    tk = _pick_tile(tk, k_active)
    tm = min(max(tm, sub), _round_up(B, sub))

    m_tiles = pl.cdiv(B, tm)
    n_tiles = n_active // tn
    k_tiles = k_active // tk
    M, N, K = m_tiles * tm, n_active, k_active

    # ---- activations: cast (bf16 streaming path) / pad only when needed.
    # TODO(synk): the K-remainder pad could instead be masked in-kernel to
    # avoid rewriting x in HBM for unaligned in_features.
    x_c = x if x.dtype == cd else x.astype(cd)
    if (M, K) != (B, in_features):
        x_c = jnp.pad(x_c, ((0, M - B), (0, K - in_features)))

    have_bias = bias_row is not None

    # ---- grid: make sure the axis that actually has >1 tiles is leading so
    # v7x's 2 TensorCores split real work (size-1 M axis would idle one TC).
    m_leading = m_tiles >= n_tiles
    if k_tiles > 1:
        if m_leading:
            grid = (m_tiles, n_tiles, k_tiles)
            x_map = lambda i, j, k: (i, k)
            w_map = lambda i, j, k: (k, j)
            b_map = lambda i, j, k: (0, j)
            o_map = lambda i, j, k: (i, j)
        else:
            grid = (n_tiles, m_tiles, k_tiles)
            x_map = lambda j, i, k: (i, k)
            w_map = lambda j, i, k: (k, j)
            b_map = lambda j, i, k: (0, j)
            o_map = lambda j, i, k: (i, j)
        semantics = ("parallel", "parallel", "arbitrary")
        scratch = [pltpu.VMEM((tm, tn), jnp.float32)]
        kernel = _mm_kernel_bias if have_bias else _mm_kernel_nobias
    else:
        if m_leading:
            grid = (m_tiles, n_tiles)
            x_map = lambda i, j: (i, 0)
            w_map = lambda i, j: (0, j)
            b_map = lambda i, j: (0, j)
            o_map = lambda i, j: (i, j)
        else:
            grid = (n_tiles, m_tiles)
            x_map = lambda j, i: (i, 0)
            w_map = lambda j, i: (0, j)
            b_map = lambda j, i: (0, j)
            o_map = lambda j, i: (i, j)
        semantics = ("parallel", "parallel")
        scratch = []
        kernel = _mm_k1_kernel_bias if have_bias else _mm_k1_kernel_nobias

    x_spec = pl.BlockSpec((tm, tk), x_map)
    w_spec = pl.BlockSpec((tk, tn), w_map)
    b_spec = pl.BlockSpec((1, tn), b_map)
    o_spec = pl.BlockSpec((tm, tn), o_map)

    in_specs = [x_spec, w_spec] + ([b_spec] if have_bias else [])
    args = (x_c, weight_t) + ((bias_row,) if have_bias else ())

    cost = pl.CostEstimate(
        flops=2 * M * N * K,
        transcendentals=0,
        bytes_accessed=(M * K * cbytes * n_tiles      # x re-read per N tile
                        + K * N * wbytes * m_tiles    # W re-read per M tile
                        + M * N * obytes              # output
                        + (N * 4 if have_bias else 0)),
    )

    # Raise the scoped-VMEM limit only if the requested tiles need it; cap at
    # 64 MiB so an aggressive (v6e-sized) plan still compiles on v7x.
    work = (2 * (tm * tk * cbytes + tk * tn * wbytes + tm * tn * obytes)
            + (tm * tn * 4 if k_tiles > 1 else 0)
            + (2 * tn * 4 if have_bias else 0))
    vmem_limit = int(min(work + (8 << 20), 64 << 20)) if work > (14 << 20) else None

    compiler_params = pltpu.CompilerParams(
        dimension_semantics=semantics,
        vmem_limit_bytes=vmem_limit,
    )

    y_p = pl.pallas_call(
        kernel,
        out_shape=jax.ShapeDtypeStruct((M, N), out_dtype),
        grid_spec=pltpu.PrefetchScalarGridSpec(
            num_scalar_prefetch=0,
            grid=grid,
            in_specs=in_specs,
            out_specs=o_spec,
            scratch_shapes=scratch,
        ),
        compiler_params=compiler_params,
        cost_estimate=cost,
    )(*args)

    # Strip lane-dense / batch padding (cheap layout plumbing).
    return y_p[:B, :out_features]


# --------------------- module-like / convenience front-ends ------------------
class DynamicLinearTPU:
    """Mirror of the PyTorch DynamicLinear module with one-time weight prep."""

    def __init__(self, weight, bias=None, compute_dtype=None):
        self.max_out_features, self.max_in_features = weight.shape
        self.compute_dtype = (jnp.dtype(compute_dtype) if compute_dtype is not None
                              else jnp.dtype(weight.dtype))
        self.weight_t = prepare_dynamic_linear_weight(weight, self.compute_dtype)
        self.bias_row = prepare_dynamic_linear_bias(bias) if bias is not None else None
        self.active_out_features = self.max_out_features

    def __call__(self, x, out_features=None, **tile_kwargs):
        if out_features is None:
            out_features = self.active_out_features
        return dynamic_linear_t(x, self.weight_t, self.bias_row, out_features,
                                compute_dtype=self.compute_dtype, **tile_kwargs)


def dynamic_linear(x, weight, bias=None, out_features=None, *,
                   compute_dtype=None, **tile_kwargs):
    """Functional API taking the raw (out, in) weight (previous-version API).

    TODO(synk): this path re-preps (transposes) the weight on every call; for
    repeated calls use DynamicLinearTPU so the prep happens once.
    """
    if out_features is None:
        out_features = weight.shape[0]
    cd = jnp.dtype(compute_dtype) if compute_dtype is not None else jnp.dtype(weight.dtype)
    w_t = prepare_dynamic_linear_weight(weight, cd)
    b_row = prepare_dynamic_linear_bias(bias) if bias is not None else None
    return dynamic_linear_t(x, w_t, b_row, out_features,
                            compute_dtype=cd, **tile_kwargs)


# ----------------------------------- tests -----------------------------------
if __name__ == "__main__":
    key = jax.random.PRNGKey(0)
    k_w, k_b, k_x, k_w2, k_b2, k_x2 = jax.random.split(key, 6)

    # ---- Test 1: small dynamic shapes, prepared-weight class, k_tiles == 1.
    max_in, max_out = 32, 24
    batch, in_f, out_f = 4, 16, 12
    bound = 1.0 / jnp.sqrt(max_in)
    W = jax.random.uniform(k_w, (max_out, max_in), jnp.float32, -bound, bound)
    b = jax.random.uniform(k_b, (max_out,), jnp.float32, -bound, bound)
    x = jax.random.normal(k_x, (batch, in_f), jnp.float32)

    layer = DynamicLinearTPU(W, b)
    y = layer(x, out_f)
    jax.block_until_ready(y)
    y_ref = x @ W[:out_f, :in_f].T + b[:out_f]
    assert y.shape == (batch, out_f)
    assert jnp.allclose(y, y_ref, atol=1e-2, rtol=1e-2)

    # ---- Test 2: multi-tile grid (K accumulation + N tiling, n-leading grid).
    max_in2, max_out2 = 384, 256
    batch2, in_f2 = 16, 256
    bound2 = 1.0 / jnp.sqrt(max_in2)
    W2 = jax.random.uniform(k_w2, (max_out2, max_in2), jnp.float32, -bound2, bound2)
    b2 = jax.random.uniform(k_b2, (max_out2,), jnp.float32, -bound2, bound2)
    x2 = jax.random.normal(k_x2, (batch2, in_f2), jnp.float32)

    y2 = dynamic_linear(x2, W2, b2, out_features=None, tn=128, tk=128)
    jax.block_until_ready(y2)
    y2_ref = x2 @ W2[:, :in_f2].T + b2
    assert y2.shape == (batch2, max_out2)
    assert jnp.allclose(y2, y2_ref, atol=1e-2, rtol=1e-2)

    # ---- Test 3: no-bias + bf16 weight/activation streaming (f32 accumulate).
    layer_bf16 = DynamicLinearTPU(W, None, compute_dtype=jnp.bfloat16)
    y3 = layer_bf16(x, out_f)
    jax.block_until_ready(y3)
    y3_ref = x @ W[:out_f, :in_f].T
    assert y3.shape == (batch, out_f)
    assert jnp.allclose(y3, y3_ref, atol=5e-2, rtol=5e-2)

    # ---- Test 4: no-bias, multi-K-tile path.
    y4 = dynamic_linear(x2, W2, None, out_features=None, tn=128, tk=128)
    jax.block_until_ready(y4)
    y4_ref = x2 @ W2[:, :in_f2].T
    assert jnp.allclose(y4, y4_ref, atol=1e-2, rtol=1e-2)

    print("KERNEL_OK")
</pallas_src>

<mosaic_0001>
module attributes {stable_mosaic.version = 11 : i64} {
  func.func @_mm_k1_kernel_bias(%arg0: i32, %arg1: i32, %arg2: memref<8x128xf32, #tpu.memory_space<vmem>>, %arg3: memref<128x128xf32, #tpu.memory_space<vmem>>, %arg4: memref<1x128xf32, #tpu.memory_space<vmem>>, %arg5: memref<8x128xf32, #tpu.memory_space<vmem>>) attributes {dimension_semantics = [#tpu.dimension_semantics<parallel>, #tpu.dimension_semantics<parallel>], iteration_bounds = array<i64: 1, 1>, scalar_prefetch = 0 : i64, scratch_operands = 0 : i64, tpu.core_type = #tpu.core_type<tc>, window_params = [{transform_indices = @transform_0, window_bounds = array<i64: 8, 128>}, {transform_indices = @transform_1, window_bounds = array<i64: 128, 128>}, {transform_indices = @transform_2, window_bounds = array<i64: 1, 128>}, {transform_indices = @transform_3, window_bounds = array<i64: 8, 128>}]} {
    %c0 = arith.constant 0 : index
    %c0_0 = arith.constant 0 : index
    %0 = vector.load %arg2[%c0, %c0_0] : memref<8x128xf32, #tpu.memory_space<vmem>>, vector<8x128xf32>
    %c0_1 = arith.constant 0 : index
    %c0_2 = arith.constant 0 : index
    %1 = vector.load %arg3[%c0_1, %c0_2] : memref<128x128xf32, #tpu.memory_space<vmem>>, vector<128x128xf32>
    %cst = arith.constant dense<0.000000e+00> : vector<8x128xf32>
    %2 = tpu.matmul %0, %1, %cst {dimension_numbers = #tpu.dot_dimension_numbers<[1], [0], [0], [1], [0, 0, 1, 1], [], []>} : vector<8x128xf32>, vector<128x128xf32>, vector<8x128xf32> -> vector<8x128xf32>
    %c0_3 = arith.constant 0 : index
    %c0_4 = arith.constant 0 : index
    %3 = vector.load %arg4[%c0_3, %c0_4] : memref<1x128xf32, #tpu.memory_space<vmem>>, vector<1x128xf32>
    %4 = vector.broadcast %3 : vector<1x128xf32> to vector<8x128xf32>
    %5 = arith.addf %2, %4 : vector<8x128xf32>
    %c0_5 = arith.constant 0 : index
    %c0_6 = arith.constant 0 : index
    %6 = vector.load %arg5[%c0_5, %c0_6] : memref<8x128xf32, #tpu.memory_space<vmem>>, vector<8x128xf32>
    tpu.vector_store %arg5[%c0_5, %c0_6], %5 {strides = array<i32>} : memref<8x128xf32, #tpu.memory_space<vmem>>, vector<8x128xf32>,
    return
  }
  func.func @transform_0(%arg0: i32, %arg1: i32) -> (i32, i32) {
    %c0_i32 = arith.constant 0 : i32
    %c0_i32_0 = arith.constant 0 : i32
    return %arg0, %c0_i32 : i32, i32
  }
  func.func @transform_1(%arg0: i32, %arg1: i32) -> (i32, i32) {
    %c0_i32 = arith.constant 0 : i32
    %c0_i32_0 = arith.constant 0 : i32
    return %c0_i32, %arg1 : i32, i32
  }
  func.func @transform_2(%arg0: i32, %arg1: i32) -> (i32, i32) {
    %c0_i32 = arith.constant 0 : i32
    %c0_i32_0 = arith.constant 0 : i32
    return %c0_i32, %arg1 : i32, i32
  }
  func.func @transform_3(%arg0: i32, %arg1: i32) -> (i32, i32) {
    %c0_i32 = arith.constant 0 : i32
    return %arg0, %arg1 : i32, i32
  }
}

</mosaic_0001>

<llo_original>
// kernel: tpu_custom_call.1
$region0: #{tpu_custom_call.1}
  #allocation0 [shape = 'u32[]', space=smem, size = 0x4, offset = 0x4, fixed_abs, tag = 'smem constant byte address 0x4 - core index']
  #allocation1 [shape = 'u32[144,128]{1,0:T(1,128)}', space=vmem, size = 0x12000, scoped, tag = 'internal scratch']
  %s0 = inlined_call_operand.hbm [shape: f32[8,128], index: 0, kind: input, shape index: {}]
  %s1 = inlined_call_operand.hbm [shape: f32[128,128], index: 1, kind: input, shape index: {}]
  %s2 = inlined_call_operand.vmem [shape: f32[1,128], index: 2, kind: input, shape index: {}]
  %s3 = inlined_call_operand.hbm [shape: f32[8,128], index: 3, kind: output, shape index: {}]
  %s4 = sld [smem:[#allocation0]]
  $region30: #{tpu_custom_call.1} parent=0
    _
  %s6 = ssub.s32 1, %s4
  %s7 = scalar_select 0, %s6, %s4
  $region1: #{tpu_custom_call.1} parent=0
    #allocation2 [shape = 'u8[4096]{0}', space=vmem, size = 0x1000, scoped, tag = 'input window, operand 0, single buffered']
    #allocation3 [shape = 's32[1]{0}', space=sflag, size = 0x4, scoped, tag = 'scoped memory for tpu_custom_call.1']
    #allocation4 [shape = 's32[1]{0}', space=sflag, size = 0x4, scoped, tag = 'scoped memory for tpu_custom_call.1']
    #allocation5 [shape = 'u8[65536]{0}', space=vmem, size = 0x10000, scoped, tag = 'input window, operand 1, single buffered']
    #allocation6 [shape = 's32[1]{0}', space=sflag, size = 0x4, scoped, tag = 'scoped memory for tpu_custom_call.1']
    #allocation7 [shape = 'u8[4096]{0}', space=vmem, size = 0x1000, scoped, tag = 'output window, operand 0, single buffered']
    %8 = vsyncpa [#allocation3], 0
    %9 = vsyncpa [#allocation6], 0
    %10 = vsyncpa [#allocation4], 0
    // Predicated region
    $region2: #{tpu_custom_call.1} parent=1 // pred_check
      _
    $region3: #{tpu_custom_call.1} parent=1 // pred_check_branch
      %12 = sbr.rel (0) target = $region5
    $region4: #{tpu_custom_call.1} parent=1 // pred_region
      %s14 = ssub.s32 128, 128
      %15 = vsyncadd [#allocation3], %s14
      %s17 = sshll.u32 [#allocation2], 4
      %s18 = int_to_ptr.vmem [resolvable:$true] %s17
      %20 = dma.hbm_to_vmem [thread:$0]  %s0, 128, %s18, [#allocation3]
    $region5: #{tpu_custom_call.1} parent=1 // pred_fallthru
      _
    // Predicated region
    $region6: #{tpu_custom_call.1} parent=1 // pred_check
      _
    $region7: #{tpu_custom_call.1} parent=1 // pred_check_branch
      %22 = sbr.rel (0) target = $region9
    $region8: #{tpu_custom_call.1} parent=1 // pred_region
      %s24 = ssub.s32 2048, 2048
      %25 = vsyncadd [#allocation6], %s24
      %s26 = sshll.u32 [#allocation5], 4
      %s27 = int_to_ptr.vmem [resolvable:$true] %s26
      %32 = dma.hbm_to_vmem [thread:$0]  %s1, 2048, %s27, [#allocation6], 128, 128, 8
    $region9: #{tpu_custom_call.1} parent=1 // pred_fallthru
      _
    // Predicated region
    $region10: #{tpu_custom_call.1} parent=1 // pred_check
      _
    $region11: #{tpu_custom_call.1} parent=1 // pred_check_branch
      %34 = sbr.rel (0) target = $region13
    $region12: #{tpu_custom_call.1} parent=1 // pred_region
      _
    $region13: #{tpu_custom_call.1} parent=1 // pred_fallthru
      _
    // Predicated region
    $region14: #{tpu_custom_call.1} parent=1 // pred_check
      _
    $region15: #{tpu_custom_call.1} parent=1 // pred_check_branch
      %36 = sbr.rel (0) target = $region17
    $region16: #{tpu_custom_call.1} parent=1 // pred_region
      %37 = dma.done [#allocation3], 128
    $region17: #{tpu_custom_call.1} parent=1 // pred_fallthru
      _
    // Predicated region
    $region18: #{tpu_custom_call.1} parent=1 // pred_check
      _
    $region19: #{tpu_custom_call.1} parent=1 // pred_check_branch
      %39 = sbr.rel (0) target = $region21
    $region20: #{tpu_custom_call.1} parent=1 // pred_region
      %40 = dma.done [#allocation6], 2048
    $region21: #{tpu_custom_call.1} parent=1 // pred_fallthru
      _
    %v41 = vld [vmem:[#allocation2] sm:$0xff]
    %v42 = vld [vmem:[#allocation5] sm:$0xff]
    %v43 = vld [vmem:[#allocation5 + $0x8] sm:$0xff]
    %v44 = vld [vmem:[#allocation5 + $0x10] sm:$0xff]
    %v45 = vld [vmem:[#allocation5 + $0x18] sm:$0xff]
    %v46 = vld [vmem:[#allocation5 + $0x20] sm:$0xff]
    %v47 = vld [vmem:[#allocation5 + $0x28] sm:$0xff]
    %v48 = vld [vmem:[#allocation5 + $0x30] sm:$0xff]
    %v49 = vld [vmem:[#allocation5 + $0x38] sm:$0xff]
    %v50 = vld [vmem:[#allocation5 + $0x40] sm:$0xff]
    %v51 = vld [vmem:[#allocation5 + $0x48] sm:$0xff]
    %v52 = vld [vmem:[#allocation5 + $0x50] sm:$0xff]
    %v53 = vld [vmem:[#allocation5 + $0x58] sm:$0xff]
    %v54 = vld [vmem:[#allocation5 + $0x60] sm:$0xff]
    %v55 = vld [vmem:[#allocation5 + $0x68] sm:$0xff]
    %v56 = vld [vmem:[#allocation5 + $0x70] sm:$0xff]
    %v57 = vld [vmem:[#allocation5 + $0x78] sm:$0xff]
    %v58 = vld [vmem:[%s2] sm:$0x1]
    %v60 = vlaneseq
    %v61 = vshrl.u32 %v60, 7
    %v62 = vsub.s32 0, %v61
    %v63 = vrot.slane %v58, %v62
    %65 = vmatprep.subr.mxu0 0.0
    %66 = vmatpush1.msra.mxu0 %v42
    %67 = vmatprep.subr.mxu0 0.0
    %68 = vmatpush1.msra.mxu0 %v43
    %69 = vmatprep.subr.mxu0 0.0
    %70 = vmatpush1.msra.mxu0 %v44
    %71 = vmatprep.subr.mxu0 0.0
    %72 = vmatpush1.msra.mxu0 %v45
    %73 = vmatprep.subr.mxu0 0.0
    %74 = vmatpush1.msra.mxu0 %v46
    %75 = vmatprep.subr.mxu0 0.0
    %76 = vmatpush1.msra.mxu0 %v47
    %77 = vmatprep.subr.mxu0 0.0
    %78 = vmatpush1.msra.mxu0 %v48
    %79 = vmatprep.subr.mxu0 0.0
    %80 = vmatpush1.msra.mxu0 %v49
    %81 = vmatprep.subr.mxu0 0.0
    %82 = vmatpush1.msra.mxu0 %v50
    %83 = vmatprep.subr.mxu0 0.0
    %84 = vmatpush1.msra.mxu0 %v51
    %85 = vmatprep.subr.mxu0 0.0
    %86 = vmatpush1.msra.mxu0 %v52
    %87 = vmatprep.subr.mxu0 0.0
    %88 = vmatpush1.msra.mxu0 %v53
    %89 = vmatprep.subr.mxu0 0.0
    %90 = vmatpush1.msra.mxu0 %v54
    %91 = vmatprep.subr.mxu0 0.0
    %92 = vmatpush1.msra.mxu0 %v55
    %93 = vmatprep.subr.mxu0 0.0
    %94 = vmatpush1.msra.mxu0 %v56
    %95 = vmatprep.subr.mxu0 0.0
    %96 = vmatpush1.msra.mxu0 %v57
    %97 = vmatprep.subr.mxu0 0.0
    %98 = vmatpush1.msra.mxu0 0.0
    %99 = vmatprep.subr.mxu0 0.0
    %100 = vmatpush1.msra.mxu0 0.0
    %101 = vmatprep.subr.mxu0 0.0
    %102 = vmatpush1.msra.mxu0 0.0
    %103 = vmatprep.subr.mxu0 0.0
    %104 = vmatpush1.msra.mxu0 0.0
    %105 = vmatprep.subr.mxu0 0.0
    %106 = vmatpush1.msra.mxu0 0.0
    %107 = vmatprep.subr.mxu0 0.0
    %108 = vmatpush1.msra.mxu0 0.0
    %109 = vmatprep.subr.mxu0 0.0
    %110 = vmatpush1.msra.mxu0 0.0
    %111 = vmatprep.subr.mxu0 0.0
    %112 = vmatpush1.msra.mxu0 0.0
    %113 = vmatprep.subr.mxu0 0.0
    %114 = vmatpush1.msra.mxu0 0.0
    %115 = vmatprep.subr.mxu0 0.0
    %116 = vmatpush1.msra.mxu0 0.0
    %117 = vmatprep.subr.mxu0 0.0
    %118 = vmatpush1.msra.mxu0 0.0
    %119 = vmatprep.subr.mxu0 0.0
    %120 = vmatpush1.msra.mxu0 0.0
    %121 = vmatprep.subr.mxu0 0.0
    %122 = vmatpush1.msra.mxu0 0.0
    %123 = vmatprep.subr.mxu0 0.0
    %124 = vmatpush1.msra.mxu0 0.0
    %125 = vmatprep.subr.mxu0 0.0
    %126 = vmatpush1.msra.mxu0 0.0
    %127 = vmatprep.subr.mxu0 0.0
    %128 = vmatpush1.msra.mxu0 0.0
    %129 = vmatprep.mubr.f32.mxu0 0.0
    %130 = vmatmul.mubr.f32.gmra.mrb[0].mxu0 %v41
    %v131 = vpop.f32.mrb[0].mxu0
    %v132 = vadd.f32 %v63, %v131
    %v133 = vpop.f32.mrb[0].mxu0
    %134 = vdwg.mxu0
    %135 = vst [vmem:[#allocation7] sm:$0xff] %v132
    // Predicated region
    $region22: #{tpu_custom_call.1} parent=1 // pred_check
      _
    $region23: #{tpu_custom_call.1} parent=1 // pred_check_branch
      %137 = sbr.rel (0) target = $region25
    $region24: #{tpu_custom_call.1} parent=1 // pred_region
      %s139 = ssub.s32 128, 128
      %140 = vsyncadd [#allocation4], %s139
      %s142 = sshll.u32 [#allocation7], 4
      %s143 = int_to_ptr.vmem [resolvable:$true] %s142
      %145 = dma.vmem_to_hbm [thread:$0]  %s143, 128, %s3, [#allocation4]
    $region25: #{tpu_custom_call.1} parent=1 // pred_fallthru
      _
    // Predicated region
    $region26: #{tpu_custom_call.1} parent=1 // pred_check
      _
    $region27: #{tpu_custom_call.1} parent=1 // pred_check_branch
      %147 = sbr.rel (0) target = $region29
    $region28: #{tpu_custom_call.1} parent=1 // pred_region
      %148 = dma.done [#allocation4], 128
    $region29: #{tpu_custom_call.1} parent=1 // pred_fallthru
      _
    %149 = vsyncpa [#allocation3], 1
    %150 = vsyncpa [#allocation6], 1
    %151 = vsyncpa [#allocation4], 1

</llo_original>
